<compile_context>
chip_gen: v7x
topology: tpu7x:2x2x1
jax: 0.10.0
libtpu: 0.0.40
codegen_flags: <defaults>
</compile_context>

<pallas_src>
import jax
import jax.numpy as jnp
from jax.experimental import pallas as pl
from jax.experimental.pallas import tpu as pltpu

LANE = 128
SUBLANE = 8


def _round_up(n, m):
    return ((n + m - 1) // m) * m


# ------------------------- parameter packing (host side) ---------------------
def pack_cvae_params(params, input_dim, latent_dim, condition_dim, hidden_layers,
                     mxu_dtype=jnp.float32):
    """Pack all weights into one lane-dense buffer, all biases into another.

    Weight fusions applied here (matched by the kernel):
      * mu / logvar heads fused column-wise                      -> "wheads"
      * encoder layer 1 + decoder condition-projection fused as
        blockdiag(we1, wd1c), consumed with the [x | cond] LHS   -> "wcomb"
    """
    h0, h1 = int(hidden_layers[0]), int(hidden_layers[1])
    idim, ldim, cdim = int(input_dim), int(latent_dim), int(condition_dim)

    wheads = jnp.concatenate([params["wmu"], params["wlv"]], axis=1)
    bheads = jnp.concatenate([params["bmu"], params["blv"]], axis=1)

    wcomb = jnp.zeros((idim + cdim, h0 + h1), jnp.float32)
    wcomb = wcomb.at[:idim, :h0].set(params["we1"])
    wcomb = wcomb.at[idim:, h0:].set(params["wd1c"])

    weights = [
        ("wcomb", wcomb),            # [idim+cdim, h0+h1]  blockdiag(we1, wd1c)
        ("we2", params["we2"]),      # [h0, h1]
        ("wheads", wheads),          # [h1, 2*latent]
        ("wd1z", params["wd1z"]),    # [latent, h1]
        ("wd2", params["wd2"]),      # [h1, h0]
        ("wd3", params["wd3"]),      # [h0, idim]
    ]
    biases = [
        ("be1", params["be1"]),
        ("be2", params["be2"]),
        ("bheads", bheads),
        ("bd1", params["bd1"]),
        ("bd2", params["bd2"]),
        ("bd3", params["bd3"]),
    ]

    mxu_dtype = jnp.dtype(mxu_dtype)
    row_align = SUBLANE * (4 // mxu_dtype.itemsize)      # 8 for f32, 16 for bf16
    padw = _round_up(max(int(w.shape[1]) for _, w in weights), LANE)

    row_off, blocks, rows = {}, [], 0
    for name, w in weights:
        r, c = int(w.shape[0]), int(w.shape[1])
        row_off[name] = (rows, r, c)
        rpad = _round_up(r, row_align)
        blocks.append(jnp.pad(w.astype(mxu_dtype), ((0, rpad - r), (0, padw - c))))
        rows += rpad
    wpack = jnp.concatenate(blocks, axis=0)

    bpadw = _round_up(max(int(b.shape[-1]) for _, b in biases), LANE)
    brows = _round_up(len(biases), SUBLANE)
    bpack = jnp.zeros((brows, bpadw), jnp.float32)      # biases stay f32
    bias_row = {}
    for i, (name, b) in enumerate(biases):
        c = int(b.shape[-1])
        bias_row[name] = (i, c)
        bpack = bpack.at[i, :c].set(b.reshape(-1).astype(jnp.float32))

    layout = dict(
        input_dim=idim, latent_dim=ldim, condition_dim=cdim, h0=h0, h1=h1,
        row_off=row_off, bias_row=bias_row,
        wrows=int(wpack.shape[0]), wcols=int(wpack.shape[1]),
        brows=int(bpack.shape[0]), bcols=int(bpack.shape[1]),
        mxu_dtype=str(mxu_dtype.name),
    )
    return wpack, bpack, layout


# ----------------------------- Pallas kernel --------------------------------
def _make_kernel(layout):
    idim = layout["input_dim"]
    ldim = layout["latent_dim"]
    cdim = layout["condition_dim"]
    h0, h1 = layout["h0"], layout["h1"]
    ro = layout["row_off"]
    br = layout["bias_row"]
    cdt = jnp.dtype(layout["mxu_dtype"])

    def wslice(w_ref, name):
        off, r, c = ro[name]
        return w_ref[off:off + r, :c]          # static slice -> cheap view/load

    def bslice(b_ref, name):
        i, c = br[name]
        return b_ref[i:i + 1, :c]

    def kernel(x_ref, cond_ref, eps_ref, w_ref, b_ref, out_ref, xc_ref):
        # Assemble the fused LHS [x | cond] in a tiny VMEM scratch (two masked
        # stores). This replaces any wrapper-side activation concatenation.
        xc_ref[:, :idim] = x_ref[...]
        xc_ref[:, idim:idim + cdim] = cond_ref[...]
        xc = xc_ref[...].astype(cdt)

        # Encoder layer 1 + decoder cond-projection in ONE MXU pass:
        #   [x | cond] @ blockdiag(we1, wd1c) = [x@we1 | cond@wd1c]
        comb = jnp.dot(xc, wslice(w_ref, "wcomb"),
                       preferred_element_type=jnp.float32)
        h = jnp.maximum(comb[:, :h0] + bslice(b_ref, "be1"), 0.0)
        cond_proj = comb[:, h0:h0 + h1]            # added into decoder layer 1

        # Encoder layer 2.
        h = jnp.dot(h.astype(cdt), wslice(w_ref, "we2"),
                    preferred_element_type=jnp.float32) + bslice(b_ref, "be2")
        h = jnp.maximum(h, 0.0)

        # Fused mu / logvar head: one matmul, static split.
        heads = jnp.dot(h.astype(cdt), wslice(w_ref, "wheads"),
                        preferred_element_type=jnp.float32) + bslice(b_ref, "bheads")
        mu = heads[:, :ldim]
        logvar = heads[:, ldim:2 * ldim]

        # Reparameterize in f32 (exp rides the EUP slot; eps lane-aligned).
        z = mu + eps_ref[...] * jnp.exp(0.5 * logvar)

        # Decoder: cat(z, cond) @ wd1 == z @ wd1z + cond_proj (already computed).
        d = (jnp.dot(z.astype(cdt), wslice(w_ref, "wd1z"),
                     preferred_element_type=jnp.float32)
             + cond_proj + bslice(b_ref, "bd1"))
        d = jnp.maximum(d, 0.0)
        d = jnp.dot(d.astype(cdt), wslice(w_ref, "wd2"),
                    preferred_element_type=jnp.float32) + bslice(b_ref, "bd2")
        d = jnp.maximum(d, 0.0)
        recon = jnp.dot(d.astype(cdt), wslice(w_ref, "wd3"),
                        preferred_element_type=jnp.float32) + bslice(b_ref, "bd3")

        # Fused output slab [recon | mu | logvar]: direct sub-slice stores,
        # no in-kernel concatenation temp.
        out_ref[:, :idim] = recon
        out_ref[:, idim:idim + 2 * ldim] = heads

    return kernel


# ----------------------------- wrapper / glue --------------------------------
def cvae_forward(wpack, bpack, layout, x, condition, eps, *, tm=2048):
    """Fused CVAE forward. Returns (recon_x, mu, logvar)."""
    B = x.shape[0]
    idim = layout["input_dim"]
    ldim = layout["latent_dim"]
    cdim = layout["condition_dim"]
    h0, h1 = layout["h0"], layout["h1"]
    out_w = idim + 2 * ldim

    x = x.astype(jnp.float32)
    condition = condition.astype(jnp.float32)
    eps = eps.astype(jnp.float32)

    # Batch tile: large (amortize ~0.35us per grid step), multiple of 8, no
    # larger than the batch, and capped so the grid has >= 2 steps whenever the
    # batch allows it (lets v7x's two TensorCores split the "parallel" axis).
    tm = _round_up(max(SUBLANE, min(int(tm), max(B, 1))), SUBLANE)
    if B > SUBLANE:
        tm = min(tm, _round_up((B + 1) // 2, SUBLANE))
    Bp = _round_up(B, tm)
    if Bp != B:  # no-op whenever tm divides B
        pad = ((0, Bp - B), (0, 0))
        x = jnp.pad(x, pad)
        condition = jnp.pad(condition, pad)
        eps = jnp.pad(eps, pad)
    grid = (Bp // tm,)

    flops = 2 * Bp * ((idim + cdim) * (h0 + h1) + h0 * h1 + h1 * 2 * ldim
                      + ldim * h1 + h1 * h0 + h0 * idim)
    bytes_accessed = int(
        (x.size + condition.size + eps.size + Bp * out_w) * 4
        + wpack.size * jnp.dtype(wpack.dtype).itemsize + bpack.size * 4)

    out = pl.pallas_call(
        _make_kernel(layout),
        out_shape=jax.ShapeDtypeStruct((Bp, out_w), jnp.float32),
        grid=grid,
        in_specs=[
            pl.BlockSpec((tm, idim), lambda i: (i, 0)),
            pl.BlockSpec((tm, cdim), lambda i: (i, 0)),
            pl.BlockSpec((tm, ldim), lambda i: (i, 0)),
            # weights / biases map to block (0,0) every step -> VMEM-resident
            pl.BlockSpec((layout["wrows"], layout["wcols"]), lambda i: (0, 0)),
            pl.BlockSpec((layout["brows"], layout["bcols"]), lambda i: (0, 0)),
        ],
        out_specs=pl.BlockSpec((tm, out_w), lambda i: (i, 0)),
        scratch_shapes=[pltpu.VMEM((tm, idim + cdim), jnp.float32)],
        compiler_params=pltpu.CompilerParams(
            dimension_semantics=("parallel",)),
        cost_estimate=pl.CostEstimate(
            flops=flops,
            transcendentals=Bp * ldim,
            bytes_accessed=bytes_accessed),
    )(x, condition, eps, wpack, bpack)

    recon = out[:B, :idim]
    mu = out[:B, idim:idim + ldim]
    logvar = out[:B, idim + ldim:idim + 2 * ldim]
    return recon, mu, logvar


# --------------------------- deterministic init ------------------------------
def _init_linear(key, in_dim, out_dim):
    """PyTorch-style Linear init (uniform +-1/sqrt(fan_in)); W pre-transposed."""
    kw, kb = jax.random.split(key)
    bound = 1.0 / jnp.sqrt(jnp.float32(in_dim))
    w = jax.random.uniform(kw, (in_dim, out_dim), jnp.float32, -bound, bound)
    b = jax.random.uniform(kb, (1, out_dim), jnp.float32, -bound, bound)
    return w, b


def init_cvae_params(key, input_dim, latent_dim, condition_dim, hidden_layers):
    keys = jax.random.split(key, 7)
    h0, h1 = hidden_layers
    we1, be1 = _init_linear(keys[0], input_dim, h0)
    we2, be2 = _init_linear(keys[1], h0, h1)
    wmu, bmu = _init_linear(keys[2], h1, latent_dim)
    wlv, blv = _init_linear(keys[3], h1, latent_dim)
    wd1, bd1 = _init_linear(keys[4], latent_dim + condition_dim, h1)
    wd2, bd2 = _init_linear(keys[5], h1, h0)
    wd3, bd3 = _init_linear(keys[6], h0, input_dim)
    return {
        "we1": we1, "be1": be1,
        "we2": we2, "be2": be2,
        "wmu": wmu, "bmu": bmu,
        "wlv": wlv, "blv": blv,
        # first decoder weight split along input rows: [latent | condition]
        "wd1z": wd1[:latent_dim, :], "wd1c": wd1[latent_dim:, :], "bd1": bd1,
        "wd2": wd2, "bd2": bd2,
        "wd3": wd3, "bd3": bd3,
    }


# ------------------------------- pure-JAX ref ---------------------------------
def cvae_forward_ref(params, x, condition, eps):
    h1 = jnp.maximum(x @ params["we1"] + params["be1"], 0.0)
    h2 = jnp.maximum(h1 @ params["we2"] + params["be2"], 0.0)
    mu = h2 @ params["wmu"] + params["bmu"]
    logvar = h2 @ params["wlv"] + params["blv"]
    z = mu + eps * jnp.exp(0.5 * logvar)
    d1 = jnp.maximum(z @ params["wd1z"] + condition @ params["wd1c"] + params["bd1"], 0.0)
    d2 = jnp.maximum(d1 @ params["wd2"] + params["bd2"], 0.0)
    recon = d2 @ params["wd3"] + params["bd3"]
    return recon, mu, logvar


# ----------------------------------- main -------------------------------------
if __name__ == "__main__":
    # Small shapes consistent with the module's MLP forward.
    batch = 8
    input_dim = 16
    latent_dim = 8
    condition_dim = 4
    hidden_layers = (32, 16)

    root = jax.random.PRNGKey(0)
    k_params, k_x, k_c, k_eps = jax.random.split(root, 4)

    params = init_cvae_params(k_params, input_dim, latent_dim,
                              condition_dim, hidden_layers)

    x = jax.random.normal(k_x, (batch, input_dim), jnp.float32)
    condition = jax.random.normal(k_c, (batch, condition_dim), jnp.float32)
    # eps plays the role of torch.randn_like(std) in reparameterize(); it is
    # drawn deterministically outside the kernel and passed in.
    eps = jax.random.normal(k_eps, (batch, latent_dim), jnp.float32)

    recon_r, mu_r, logvar_r = cvae_forward_ref(params, x, condition, eps)

    # --- f32 MXU operands: matches the PyTorch reference to ~1e-5 ---
    wpack, bpack, layout = pack_cvae_params(
        params, input_dim, latent_dim, condition_dim, hidden_layers,
        mxu_dtype=jnp.float32)
    recon, mu, logvar = cvae_forward(wpack, bpack, layout, x, condition, eps)
    jax.block_until_ready((recon, mu, logvar))

    assert recon.shape == (batch, input_dim)
    assert mu.shape == (batch, latent_dim)
    assert logvar.shape == (batch, latent_dim)
    assert jnp.allclose(recon, recon_r, atol=1e-5, rtol=1e-5)
    assert jnp.allclose(mu, mu_r, atol=1e-5, rtol=1e-5)
    assert jnp.allclose(logvar, logvar_r, atol=1e-5, rtol=1e-5)

    # --- bf16 MXU operands (f32 accumulate / element-wise): the recommended
    #     fast path on v6e / v7x. Looser agreement by construction. ---
    wpack_bf, bpack_bf, layout_bf = pack_cvae_params(
        params, input_dim, latent_dim, condition_dim, hidden_layers,
        mxu_dtype=jnp.bfloat16)
    recon_b, mu_b, logvar_b = cvae_forward(wpack_bf, bpack_bf, layout_bf,
                                           x, condition, eps)
    jax.block_until_ready((recon_b, mu_b, logvar_b))
    assert jnp.allclose(recon_b, recon_r, atol=1e-1, rtol=1e-1)
    assert jnp.allclose(mu_b, mu_r, atol=1e-1, rtol=1e-1)
    assert jnp.allclose(logvar_b, logvar_r, atol=1e-1, rtol=1e-1)

    print("KERNEL_OK")
</pallas_src>

<mosaic_0001>
module attributes {stable_mosaic.version = 11 : i64} {
  func.func @kernel(%arg0: i32, %arg1: memref<8x16xf32, #tpu.memory_space<vmem>>, %arg2: memref<8x4xf32, #tpu.memory_space<vmem>>, %arg3: memref<8x8xf32, #tpu.memory_space<vmem>>, %arg4: memref<128x128xf32, #tpu.memory_space<vmem>>, %arg5: memref<8x128xf32, #tpu.memory_space<vmem>>, %arg6: memref<8x32xf32, #tpu.memory_space<vmem>>, %arg7: memref<8x20xf32, #tpu.memory_space<vmem>>) attributes {dimension_semantics = [#tpu.dimension_semantics<parallel>], iteration_bounds = array<i64: 1>, scalar_prefetch = 0 : i64, scratch_operands = 1 : i64, tpu.core_type = #tpu.core_type<tc>, window_params = [{transform_indices = @transform_0, window_bounds = array<i64: 8, 16>}, {transform_indices = @transform_1, window_bounds = array<i64: 8, 4>}, {transform_indices = @transform_2, window_bounds = array<i64: 8, 8>}, {pipeline_mode = #tpu.pipeline_mode<synchronous>, transform_indices = @transform_3, window_bounds = array<i64: 128, 128>}, {pipeline_mode = #tpu.pipeline_mode<synchronous>, transform_indices = @transform_4, window_bounds = array<i64: 8, 128>}, {transform_indices = @transform_5, window_bounds = array<i64: 8, 32>}]} {
    %c0 = arith.constant 0 : index
    %c0_0 = arith.constant 0 : index
    %0 = vector.load %arg1[%c0, %c0_0] : memref<8x16xf32, #tpu.memory_space<vmem>>, vector<8x16xf32>
    %c0_1 = arith.constant 0 : index
    %c0_2 = arith.constant 0 : index
    %1 = vector.load %arg7[%c0_1, %c0_2] : memref<8x20xf32, #tpu.memory_space<vmem>>, vector<8x16xf32>
    tpu.vector_store %arg7[%c0_1, %c0_2], %0 {strides = array<i32>} : memref<8x20xf32, #tpu.memory_space<vmem>>, vector<8x16xf32>,
    %c0_3 = arith.constant 0 : index
    %c0_4 = arith.constant 0 : index
    %2 = vector.load %arg2[%c0_3, %c0_4] : memref<8x4xf32, #tpu.memory_space<vmem>>, vector<8x4xf32>
    %c0_5 = arith.constant 0 : index
    %c16 = arith.constant 16 : index
    %3 = vector.load %arg7[%c0_5, %c16] : memref<8x20xf32, #tpu.memory_space<vmem>>, vector<8x4xf32>
    tpu.vector_store %arg7[%c0_5, %c16], %2 {strides = array<i32>} : memref<8x20xf32, #tpu.memory_space<vmem>>, vector<8x4xf32>,
    %c0_6 = arith.constant 0 : index
    %c0_7 = arith.constant 0 : index
    %4 = vector.load %arg7[%c0_6, %c0_7] : memref<8x20xf32, #tpu.memory_space<vmem>>, vector<8x20xf32>
    %c0_8 = arith.constant 0 : index
    %c0_9 = arith.constant 0 : index
    %5 = vector.load %arg4[%c0_8, %c0_9] : memref<128x128xf32, #tpu.memory_space<vmem>>, vector<20x48xf32>
    %cst = arith.constant dense<0.000000e+00> : vector<8x48xf32>
    %6 = tpu.matmul %4, %5, %cst {dimension_numbers = #tpu.dot_dimension_numbers<[1], [0], [0], [1], [0, 0, 1, 1], [], []>} : vector<8x20xf32>, vector<20x48xf32>, vector<8x48xf32> -> vector<8x48xf32>
    %7 = vector.extract_strided_slice %6 {offsets = [0, 0], sizes = [8, 32], strides = [1, 1]} : vector<8x48xf32> to vector<8x32xf32>
    %c0_10 = arith.constant 0 : index
    %c0_11 = arith.constant 0 : index
    %8 = vector.load %arg5[%c0_10, %c0_11] : memref<8x128xf32, #tpu.memory_space<vmem>>, vector<1x32xf32>
    %9 = vector.broadcast %8 : vector<1x32xf32> to vector<8x32xf32>
    %10 = arith.addf %7, %9 : vector<8x32xf32>
    %cst_12 = arith.constant 0.000000e+00 : f32
    %11 = vector.broadcast %cst_12 : f32 to vector<8x32xf32>
    %12 = arith.maximumf %10, %11 : vector<8x32xf32>
    %13 = vector.extract_strided_slice %6 {offsets = [0, 32], sizes = [8, 16], strides = [1, 1]} : vector<8x48xf32> to vector<8x16xf32>
    %c24 = arith.constant 24 : index
    %c0_13 = arith.constant 0 : index
    %14 = vector.load %arg4[%c24, %c0_13] : memref<128x128xf32, #tpu.memory_space<vmem>>, vector<32x16xf32>
    %cst_14 = arith.constant dense<0.000000e+00> : vector<8x16xf32>
    %15 = tpu.matmul %12, %14, %cst_14 {dimension_numbers = #tpu.dot_dimension_numbers<[1], [0], [0], [1], [0, 0, 1, 1], [], []>} : vector<8x32xf32>, vector<32x16xf32>, vector<8x16xf32> -> vector<8x16xf32>
    %c1 = arith.constant 1 : index
    %c0_15 = arith.constant 0 : index
    %16 = vector.load %arg5[%c1, %c0_15] : memref<8x128xf32, #tpu.memory_space<vmem>>, vector<1x16xf32>
    %17 = vector.broadcast %16 : vector<1x16xf32> to vector<8x16xf32>
    %18 = arith.addf %15, %17 : vector<8x16xf32>
    %cst_16 = arith.constant 0.000000e+00 : f32
    %19 = vector.broadcast %cst_16 : f32 to vector<8x16xf32>
    %20 = arith.maximumf %18, %19 : vector<8x16xf32>
    %c56 = arith.constant 56 : index
    %c0_17 = arith.constant 0 : index
    %21 = vector.load %arg4[%c56, %c0_17] : memref<128x128xf32, #tpu.memory_space<vmem>>, vector<16x16xf32>
    %cst_18 = arith.constant dense<0.000000e+00> : vector<8x16xf32>
    %22 = tpu.matmul %20, %21, %cst_18 {dimension_numbers = #tpu.dot_dimension_numbers<[1], [0], [0], [1], [0, 0, 1, 1], [], []>} : vector<8x16xf32>, vector<16x16xf32>, vector<8x16xf32> -> vector<8x16xf32>
    %c2 = arith.constant 2 : index
    %c0_19 = arith.constant 0 : index
    %23 = vector.load %arg5[%c2, %c0_19] : memref<8x128xf32, #tpu.memory_space<vmem>>, vector<1x16xf32>
    %24 = vector.broadcast %23 : vector<1x16xf32> to vector<8x16xf32>
    %25 = arith.addf %22, %24 : vector<8x16xf32>
    %26 = vector.extract_strided_slice %25 {offsets = [0, 0], sizes = [8, 8], strides = [1, 1]} : vector<8x16xf32> to vector<8x8xf32>
    %27 = vector.extract_strided_slice %25 {offsets = [0, 8], sizes = [8, 8], strides = [1, 1]} : vector<8x16xf32> to vector<8x8xf32>
    %c0_20 = arith.constant 0 : index
    %c0_21 = arith.constant 0 : index
    %28 = vector.load %arg3[%c0_20, %c0_21] : memref<8x8xf32, #tpu.memory_space<vmem>>, vector<8x8xf32>
    %cst_22 = arith.constant 5.000000e-01 : f32
    %29 = vector.broadcast %cst_22 : f32 to vector<8x8xf32>
    %30 = arith.mulf %29, %27 : vector<8x8xf32>
    %31 = math.exp %30 : vector<8x8xf32>
    %32 = arith.mulf %28, %31 : vector<8x8xf32>
    %33 = arith.addf %26, %32 : vector<8x8xf32>
    %c72 = arith.constant 72 : index
    %c0_23 = arith.constant 0 : index
    %34 = vector.load %arg4[%c72, %c0_23] : memref<128x128xf32, #tpu.memory_space<vmem>>, vector<8x16xf32>
    %cst_24 = arith.constant dense<0.000000e+00> : vector<8x16xf32>
    %35 = tpu.matmul %33, %34, %cst_24 {dimension_numbers = #tpu.dot_dimension_numbers<[1], [0], [0], [1], [0, 0, 1, 1], [], []>} : vector<8x8xf32>, vector<8x16xf32>, vector<8x16xf32> -> vector<8x16xf32>
    %36 = arith.addf %35, %13 : vector<8x16xf32>
    %c3 = arith.constant 3 : index
    %c0_25 = arith.constant 0 : index
    %37 = vector.load %arg5[%c3, %c0_25] : memref<8x128xf32, #tpu.memory_space<vmem>>, vector<1x16xf32>
    %38 = vector.broadcast %37 : vector<1x16xf32> to vector<8x16xf32>
    %39 = arith.addf %36, %38 : vector<8x16xf32>
    %cst_26 = arith.constant 0.000000e+00 : f32
    %40 = vector.broadcast %cst_26 : f32 to vector<8x16xf32>
    %41 = arith.maximumf %39, %40 : vector<8x16xf32>
    %c80 = arith.constant 80 : index
    %c0_27 = arith.constant 0 : index
    %42 = vector.load %arg4[%c80, %c0_27] : memref<128x128xf32, #tpu.memory_space<vmem>>, vector<16x32xf32>
    %cst_28 = arith.constant dense<0.000000e+00> : vector<8x32xf32>
    %43 = tpu.matmul %41, %42, %cst_28 {dimension_numbers = #tpu.dot_dimension_numbers<[1], [0], [0], [1], [0, 0, 1, 1], [], []>} : vector<8x16xf32>, vector<16x32xf32>, vector<8x32xf32> -> vector<8x32xf32>
    %c4 = arith.constant 4 : index
    %c0_29 = arith.constant 0 : index
    %44 = vector.load %arg5[%c4, %c0_29] : memref<8x128xf32, #tpu.memory_space<vmem>>, vector<1x32xf32>
    %45 = vector.broadcast %44 : vector<1x32xf32> to vector<8x32xf32>
    %46 = arith.addf %43, %45 : vector<8x32xf32>
    %cst_30 = arith.constant 0.000000e+00 : f32
    %47 = vector.broadcast %cst_30 : f32 to vector<8x32xf32>
    %48 = arith.maximumf %46, %47 : vector<8x32xf32>
    %c96 = arith.constant 96 : index
    %c0_31 = arith.constant 0 : index
    %49 = vector.load %arg4[%c96, %c0_31] : memref<128x128xf32, #tpu.memory_space<vmem>>, vector<32x16xf32>
    %cst_32 = arith.constant dense<0.000000e+00> : vector<8x16xf32>
    %50 = tpu.matmul %48, %49, %cst_32 {dimension_numbers = #tpu.dot_dimension_numbers<[1], [0], [0], [1], [0, 0, 1, 1], [], []>} : vector<8x32xf32>, vector<32x16xf32>, vector<8x16xf32> -> vector<8x16xf32>
    %c5 = arith.constant 5 : index
    %c0_33 = arith.constant 0 : index
    %51 = vector.load %arg5[%c5, %c0_33] : memref<8x128xf32, #tpu.memory_space<vmem>>, vector<1x16xf32>
    %52 = vector.broadcast %51 : vector<1x16xf32> to vector<8x16xf32>
    %53 = arith.addf %50, %52 : vector<8x16xf32>
    %c0_34 = arith.constant 0 : index
    %c0_35 = arith.constant 0 : index
    %54 = vector.load %arg6[%c0_34, %c0_35] : memref<8x32xf32, #tpu.memory_space<vmem>>, vector<8x16xf32>
    tpu.vector_store %arg6[%c0_34, %c0_35], %53 {strides = array<i32>} : memref<8x32xf32, #tpu.memory_space<vmem>>, vector<8x16xf32>,
    %c0_36 = arith.constant 0 : index
    %c16_37 = arith.constant 16 : index
    %55 = vector.load %arg6[%c0_36, %c16_37] : memref<8x32xf32, #tpu.memory_space<vmem>>, vector<8x16xf32>
    tpu.vector_store %arg6[%c0_36, %c16_37], %25 {strides = array<i32>} : memref<8x32xf32, #tpu.memory_space<vmem>>, vector<8x16xf32>,
    return
  }
  func.func @transform_0(%arg0: i32) -> (i32, i32) {
    %c0_i32 = arith.constant 0 : i32
    %c0_i32_0 = arith.constant 0 : i32
    return %arg0, %c0_i32 : i32, i32
  }
  func.func @transform_1(%arg0: i32) -> (i32, i32) {
    %c0_i32 = arith.constant 0 : i32
    %c0_i32_0 = arith.constant 0 : i32
    return %arg0, %c0_i32 : i32, i32
  }
  func.func @transform_2(%arg0: i32) -> (i32, i32) {
    %c0_i32 = arith.constant 0 : i32
    %c0_i32_0 = arith.constant 0 : i32
    return %arg0, %c0_i32 : i32, i32
  }
  func.func @transform_3(%arg0: i32) -> (i32, i32) {
    %c0_i32 = arith.constant 0 : i32
    %c0_i32_0 = arith.constant 0 : i32
    %c0_i32_1 = arith.constant 0 : i32
    return %c0_i32, %c0_i32_0 : i32, i32
  }
  func.func @transform_4(%arg0: i32) -> (i32, i32) {
    %c0_i32 = arith.constant 0 : i32
    %c0_i32_0 = arith.constant 0 : i32
    %c0_i32_1 = arith.constant 0 : i32
    return %c0_i32, %c0_i32_0 : i32, i32
  }
  func.func @transform_5(%arg0: i32) -> (i32, i32) {
    %c0_i32 = arith.constant 0 : i32
    %c0_i32_0 = arith.constant 0 : i32
    return %arg0, %c0_i32 : i32, i32
  }
}

</mosaic_0001>

<llo_original>
// kernel: tpu_custom_call.1
$region0: #{tpu_custom_call.1}
  #allocation0 [shape = 'u32[]', space=smem, size = 0x4, offset = 0x4, fixed_abs, tag = 'smem constant byte address 0x4 - core index']
  #allocation1 [shape = 'u32[144,128]{1,0:T(1,128)}', space=vmem, size = 0x12000, scoped, tag = 'internal scratch']
  #allocation2 [shape = 'f32[8,20]{1,0:T(8,128)}', space=vmem, size = 0x1000, scoped, tag = 'scratch operand']
  %s0 = inlined_call_operand.vmem [shape: f32[8,16], index: 0, kind: input, shape index: {}]
  %s1 = inlined_call_operand.vmem [shape: f32[8,4], index: 1, kind: input, shape index: {}]
  %s2 = inlined_call_operand.vmem [shape: f32[8,8], index: 2, kind: input, shape index: {}]
  %s3 = inlined_call_operand.hbm [shape: f32[128,128], index: 3, kind: input, shape index: {}]
  %s4 = inlined_call_operand.vmem [shape: f32[8,128], index: 4, kind: input, shape index: {}]
  %s5 = inlined_call_operand.hbm [shape: f32[8,32], index: 5, kind: output, shape index: {}]
  %s6 = sld [smem:[#allocation0]]
  $region34: #{tpu_custom_call.1} parent=0
    _
  %s8 = ssub.s32 1, %s6
  %s9 = scalar_select 0, %s8, %s6
  $region1: #{tpu_custom_call.1} parent=0
    #allocation3 [shape = 'u8[65536]{0}', space=vmem, size = 0x10000, scoped, tag = 'input window, operand 3, single buffered']
    #allocation4 [shape = 's32[1]{0}', space=sflag, size = 0x4, scoped, tag = 'scoped memory for tpu_custom_call.1']
    #allocation5 [shape = 's32[1]{0}', space=sflag, size = 0x4, scoped, tag = 'scoped memory for tpu_custom_call.1']
    #allocation6 [shape = 'u8[4096]{0}', space=vmem, size = 0x1000, scoped, tag = 'output window, operand 0, single buffered']
    %10 = vsyncpa [#allocation4], 0
    %11 = vsyncpa [#allocation5], 0
    // Predicated region
    $region2: #{tpu_custom_call.1} parent=1 // pred_check
      _
    $region3: #{tpu_custom_call.1} parent=1 // pred_check_branch
      %13 = sbr.rel (0) target = $region5
    $region4: #{tpu_custom_call.1} parent=1 // pred_region
      _
    $region5: #{tpu_custom_call.1} parent=1 // pred_fallthru
      _
    // Predicated region
    $region6: #{tpu_custom_call.1} parent=1 // pred_check
      _
    $region7: #{tpu_custom_call.1} parent=1 // pred_check_branch
      %15 = sbr.rel (0) target = $region9
    $region8: #{tpu_custom_call.1} parent=1 // pred_region
      _
    $region9: #{tpu_custom_call.1} parent=1 // pred_fallthru
      _
    // Predicated region
    $region10: #{tpu_custom_call.1} parent=1 // pred_check
      _
    $region11: #{tpu_custom_call.1} parent=1 // pred_check_branch
      %17 = sbr.rel (0) target = $region13
    $region12: #{tpu_custom_call.1} parent=1 // pred_region
      _
    $region13: #{tpu_custom_call.1} parent=1 // pred_fallthru
      _
    // Predicated region
    $region14: #{tpu_custom_call.1} parent=1 // pred_check
      _
    $region15: #{tpu_custom_call.1} parent=1 // pred_check_branch
      %19 = sbr.rel (0) target = $region17
    $region16: #{tpu_custom_call.1} parent=1 // pred_region
      %s21 = ssub.s32 2048, 2048
      %22 = vsyncadd [#allocation4], %s21
      %s23 = sshll.u32 [#allocation3], 4
      %s24 = int_to_ptr.vmem [resolvable:$true] %s23
      %29 = dma.hbm_to_vmem [thread:$0]  %s3, 2048, %s24, [#allocation4], 128, 128, 8
    $region17: #{tpu_custom_call.1} parent=1 // pred_fallthru
      _
    // Predicated region
    $region18: #{tpu_custom_call.1} parent=1 // pred_check
      _
    $region19: #{tpu_custom_call.1} parent=1 // pred_check_branch
      %31 = sbr.rel (0) target = $region21
    $region20: #{tpu_custom_call.1} parent=1 // pred_region
      _
    $region21: #{tpu_custom_call.1} parent=1 // pred_fallthru
      _
    // Predicated region
    $region22: #{tpu_custom_call.1} parent=1 // pred_check
      _
    $region23: #{tpu_custom_call.1} parent=1 // pred_check_branch
      %33 = sbr.rel (0) target = $region25
    $region24: #{tpu_custom_call.1} parent=1 // pred_region
      %34 = dma.done [#allocation4], 2048
    $region25: #{tpu_custom_call.1} parent=1 // pred_fallthru
      _
    %v35 = vld [vmem:[%s0] sm:$0xff]
    %vm36 = vcmask 130048
    %37 = vst.msk [vmem:[#allocation2] sm:$0xff] %vm36, %v35
    %v38 = vld [vmem:[%s1] sm:$0xff]
    %40 = vrot.lane.b32.xlu0 %v38, 16
    %v41 = vpop.permute.xlu0 %40
    %vm43 = vcmask 162944
    %44 = vst.msk [vmem:[#allocation2] sm:$0xff] %vm43, %v41
    %v45 = vld [vmem:[#allocation2] sm:$0xff]
    %v46 = vld [vmem:[#allocation3] sm:$0xff]
    %v47 = vld [vmem:[#allocation3 + $0x8] sm:$0xff]
    %v48 = vld [vmem:[#allocation3 + $0x10] sm:$0xf]
    %vm49 = vcmask 162816
    %v51 = vsel %vm49, %v45, 0
    %vm53 = vcmask 1043456
    %v55 = vsel %vm53, %v48, 0
    %57 = vmatprep.subr.mxu0 0.0
    %58 = vmatpush1.msra.mxu0 %v46
    %59 = vmatprep.subr.mxu0 0.0
    %60 = vmatpush1.msra.mxu0 %v47
    %61 = vmatprep.subr.mxu0 0.0
    %62 = vmatpush1.msra.mxu0 %v55
    %63 = vmatprep.subr.mxu0 0.0
    %64 = vmatpush1.msra.mxu0 0.0
    %65 = vmatprep.subr.mxu0 0.0
    %66 = vmatpush1.msra.mxu0 0.0
    %67 = vmatprep.subr.mxu0 0.0
    %68 = vmatpush1.msra.mxu0 0.0
    %69 = vmatprep.subr.mxu0 0.0
    %70 = vmatpush1.msra.mxu0 0.0
    %71 = vmatprep.subr.mxu0 0.0
    %72 = vmatpush1.msra.mxu0 0.0
    %73 = vmatprep.subr.mxu0 0.0
    %74 = vmatpush1.msra.mxu0 0.0
    %75 = vmatprep.subr.mxu0 0.0
    %76 = vmatpush1.msra.mxu0 0.0
    %77 = vmatprep.subr.mxu0 0.0
    %78 = vmatpush1.msra.mxu0 0.0
    %79 = vmatprep.subr.mxu0 0.0
    %80 = vmatpush1.msra.mxu0 0.0
    %81 = vmatprep.subr.mxu0 0.0
    %82 = vmatpush1.msra.mxu0 0.0
    %83 = vmatprep.subr.mxu0 0.0
    %84 = vmatpush1.msra.mxu0 0.0
    %85 = vmatprep.subr.mxu0 0.0
    %86 = vmatpush1.msra.mxu0 0.0
    %87 = vmatprep.subr.mxu0 0.0
    %88 = vmatpush1.msra.mxu0 0.0
    %89 = vmatprep.subr.mxu0 0.0
    %90 = vmatpush1.msra.mxu0 0.0
    %91 = vmatprep.subr.mxu0 0.0
    %92 = vmatpush1.msra.mxu0 0.0
    %93 = vmatprep.subr.mxu0 0.0
    %94 = vmatpush1.msra.mxu0 0.0
    %95 = vmatprep.subr.mxu0 0.0
    %96 = vmatpush1.msra.mxu0 0.0
    %97 = vmatprep.subr.mxu0 0.0
    %98 = vmatpush1.msra.mxu0 0.0
    %99 = vmatprep.subr.mxu0 0.0
    %100 = vmatpush1.msra.mxu0 0.0
    %101 = vmatprep.subr.mxu0 0.0
    %102 = vmatpush1.msra.mxu0 0.0
    %103 = vmatprep.subr.mxu0 0.0
    %104 = vmatpush1.msra.mxu0 0.0
    %105 = vmatprep.subr.mxu0 0.0
    %106 = vmatpush1.msra.mxu0 0.0
    %107 = vmatprep.subr.mxu0 0.0
    %108 = vmatpush1.msra.mxu0 0.0
    %109 = vmatprep.subr.mxu0 0.0
    %110 = vmatpush1.msra.mxu0 0.0
    %111 = vmatprep.subr.mxu0 0.0
    %112 = vmatpush1.msra.mxu0 0.0
    %113 = vmatprep.subr.mxu0 0.0
    %114 = vmatpush1.msra.mxu0 0.0
    %115 = vmatprep.subr.mxu0 0.0
    %116 = vmatpush1.msra.mxu0 0.0
    %117 = vmatprep.subr.mxu0 0.0
    %118 = vmatpush1.msra.mxu0 0.0
    %119 = vmatprep.subr.mxu0 0.0
    %120 = vmatpush1.msra.mxu0 0.0
    %121 = vmatprep.mubr.f32.mxu0 0.0
    %122 = vmatmul.mubr.f32.gmra.mrb[0].mxu0 %v51
    %v123 = vpop.f32.mrb[0].mxu0
    %v124 = vadd.f32 0.0, %v123
    %v125 = vpop.f32.mrb[0].mxu0
    %126 = vdwg.mxu0
    %v127 = vld [vmem:[%s4] sm:$0x1]
    %v128 = vlaneseq
    %v129 = vshrl.u32 %v128, 7
    %v130 = vsub.s32 0, %v129
    %v131 = vrot.slane %v127, %v130
    %v132 = vadd.f32 %v124, %v131
    %v133 = vmax.f32 %v132, 0.0
    %v134 = vld [vmem:[#allocation3 + $0x18] sm:$0xff]
    %v135 = vld [vmem:[#allocation3 + $0x20] sm:$0xff]
    %v136 = vld [vmem:[#allocation3 + $0x28] sm:$0xff]
    %v137 = vld [vmem:[#allocation3 + $0x30] sm:$0xff]
    %v138 = vld [vmem:[%s4 + $0x1] sm:$0x1]
    %v139 = vlaneseq
    %v140 = vshrl.u32 %v139, 7
    %v141 = vsub.s32 0, %v140
    %v142 = vrot.slane %v138, %v141
    %vm143 = vcmask 261120
    %v145 = vsel %vm143, %v133, 0
    %147 = vmatprep.subr.mxu0 0.0
    %148 = vmatpush1.msra.mxu0 %v134
    %149 = vmatprep.subr.mxu0 0.0
    %150 = vmatpush1.msra.mxu0 %v135
    %151 = vmatprep.subr.mxu0 0.0
    %152 = vmatpush1.msra.mxu0 %v136
    %153 = vmatprep.subr.mxu0 0.0
    %154 = vmatpush1.msra.mxu0 %v137
    %155 = vmatprep.subr.mxu0 0.0
    %156 = vmatpush1.msra.mxu0 0.0
    %157 = vmatprep.subr.mxu0 0.0
    %158 = vmatpush1.msra.mxu0 0.0
    %159 = vmatprep.subr.mxu0 0.0
    %160 = vmatpush1.msra.mxu0 0.0
    %161 = vmatprep.subr.mxu0 0.0
    %162 = vmatpush1.msra.mxu0 0.0
    %163 = vmatprep.subr.mxu0 0.0
    %164 = vmatpush1.msra.mxu0 0.0
    %165 = vmatprep.subr.mxu0 0.0
    %166 = vmatpush1.msra.mxu0 0.0
    %167 = vmatprep.subr.mxu0 0.0
    %168 = vmatpush1.msra.mxu0 0.0
    %169 = vmatprep.subr.mxu0 0.0
    %170 = vmatpush1.msra.mxu0 0.0
    %171 = vmatprep.subr.mxu0 0.0
    %172 = vmatpush1.msra.mxu0 0.0
    %173 = vmatprep.subr.mxu0 0.0
    %174 = vmatpush1.msra.mxu0 0.0
    %175 = vmatprep.subr.mxu0 0.0
    %176 = vmatpush1.msra.mxu0 0.0
    %177 = vmatprep.subr.mxu0 0.0
    %178 = vmatpush1.msra.mxu0 0.0
    %179 = vmatprep.subr.mxu0 0.0
    %180 = vmatpush1.msra.mxu0 0.0
    %181 = vmatprep.subr.mxu0 0.0
    %182 = vmatpush1.msra.mxu0 0.0
    %183 = vmatprep.subr.mxu0 0.0
    %184 = vmatpush1.msra.mxu0 0.0
    %185 = vmatprep.subr.mxu0 0.0
    %186 = vmatpush1.msra.mxu0 0.0
    %187 = vmatprep.subr.mxu0 0.0
    %188 = vmatpush1.msra.mxu0 0.0
    %189 = vmatprep.subr.mxu0 0.0
    %190 = vmatpush1.msra.mxu0 0.0
    %191 = vmatprep.subr.mxu0 0.0
    %192 = vmatpush1.msra.mxu0 0.0
    %193 = vmatprep.subr.mxu0 0.0
    %194 = vmatpush1.msra.mxu0 0.0
    %195 = vmatprep.subr.mxu0 0.0
    %196 = vmatpush1.msra.mxu0 0.0
    %197 = vmatprep.subr.mxu0 0.0
    %198 = vmatpush1.msra.mxu0 0.0
    %199 = vmatprep.subr.mxu0 0.0
    %200 = vmatpush1.msra.mxu0 0.0
    %201 = vmatprep.subr.mxu0 0.0
    %202 = vmatpush1.msra.mxu0 0.0
    %203 = vmatprep.subr.mxu0 0.0
    %204 = vmatpush1.msra.mxu0 0.0
    %205 = vmatprep.subr.mxu0 0.0
    %206 = vmatpush1.msra.mxu0 0.0
    %207 = vmatprep.subr.mxu0 0.0
    %208 = vmatpush1.msra.mxu0 0.0
    %209 = vmatprep.subr.mxu0 0.0
    %210 = vmatpush1.msra.mxu0 0.0
    %211 = vmatprep.mubr.f32.mxu0 0.0
    %212 = vmatmul.mubr.f32.gmra.mrb[0].mxu0 %v145
    %v213 = vpop.f32.mrb[0].mxu0
    %v214 = vadd.f32 %v142, %v213
    %v215 = vpop.f32.mrb[0].mxu0
    %216 = vdwg.mxu0
    %v217 = vmax.f32 %v214, 0.0
    %v218 = vld [vmem:[#allocation3 + $0x38] sm:$0xff]
    %v219 = vld [vmem:[#allocation3 + $0x40] sm:$0xff]
    %v220 = vld [vmem:[%s4 + $0x2] sm:$0x1]
    %v221 = vlaneseq
    %v222 = vshrl.u32 %v221, 7
    %v223 = vsub.s32 0, %v222
    %v224 = vrot.slane %v220, %v223
    %v226 = vsel %vm36, %v217, 0
    %228 = vmatprep.subr.mxu0 0.0
    %229 = vmatpush1.msra.mxu0 %v218
    %230 = vmatprep.subr.mxu0 0.0
    %231 = vmatpush1.msra.mxu0 %v219
    %232 = vmatprep.subr.mxu0 0.0
    %233 = vmatpush1.msra.mxu0 0.0
    %234 = vmatprep.subr.mxu0 0.0
    %235 = vmatpush1.msra.mxu0 0.0
    %236 = vmatprep.subr.mxu0 0.0
    %237 = vmatpush1.msra.mxu0 0.0
    %238 = vmatprep.subr.mxu0 0.0
    %239 = vmatpush1.msra.mxu0 0.0
    %240 = vmatprep.subr.mxu0 0.0
    %241 = vmatpush1.msra.mxu0 0.0
    %242 = vmatprep.subr.mxu0 0.0
    %243 = vmatpush1.msra.mxu0 0.0
    %244 = vmatprep.subr.mxu0 0.0
    %245 = vmatpush1.msra.mxu0 0.0
    %246 = vmatprep.subr.mxu0 0.0
    %247 = vmatpush1.msra.mxu0 0.0
    %248 = vmatprep.subr.mxu0 0.0
    %249 = vmatpush1.msra.mxu0 0.0
    %250 = vmatprep.subr.mxu0 0.0
    %251 = vmatpush1.msra.mxu0 0.0
    %252 = vmatprep.subr.mxu0 0.0
    %253 = vmatpush1.msra.mxu0 0.0
    %254 = vmatprep.subr.mxu0 0.0
    %255 = vmatpush1.msra.mxu0 0.0
    %256 = vmatprep.subr.mxu0 0.0
    %257 = vmatpush1.msra.mxu0 0.0
    %258 = vmatprep.subr.mxu0 0.0
    %259 = vmatpush1.msra.mxu0 0.0
    %260 = vmatprep.subr.mxu0 0.0
    %261 = vmatpush1.msra.mxu0 0.0
    %262 = vmatprep.subr.mxu0 0.0
    %263 = vmatpush1.msra.mxu0 0.0
    %264 = vmatprep.subr.mxu0 0.0
    %265 = vmatpush1.msra.mxu0 0.0
    %266 = vmatprep.subr.mxu0 0.0
    %267 = vmatpush1.msra.mxu0 0.0
    %268 = vmatprep.subr.mxu0 0.0
    %269 = vmatpush1.msra.mxu0 0.0
    %270 = vmatprep.subr.mxu0 0.0
    %271 = vmatpush1.msra.mxu0 0.0
    %272 = vmatprep.subr.mxu0 0.0
    %273 = vmatpush1.msra.mxu0 0.0
    %274 = vmatprep.subr.mxu0 0.0
    %275 = vmatpush1.msra.mxu0 0.0
    %276 = vmatprep.subr.mxu0 0.0
    %277 = vmatpush1.msra.mxu0 0.0
    %278 = vmatprep.subr.mxu0 0.0
    %279 = vmatpush1.msra.mxu0 0.0
    %280 = vmatprep.subr.mxu0 0.0
    %281 = vmatpush1.msra.mxu0 0.0
    %282 = vmatprep.subr.mxu0 0.0
    %283 = vmatpush1.msra.mxu0 0.0
    %284 = vmatprep.subr.mxu0 0.0
    %285 = vmatpush1.msra.mxu0 0.0
    %286 = vmatprep.subr.mxu0 0.0
    %287 = vmatpush1.msra.mxu0 0.0
    %288 = vmatprep.subr.mxu0 0.0
    %289 = vmatpush1.msra.mxu0 0.0
    %290 = vmatprep.subr.mxu0 0.0
    %291 = vmatpush1.msra.mxu0 0.0
    %292 = vmatprep.mubr.f32.mxu0 0.0
    %293 = vmatmul.mubr.f32.gmra.mrb[0].mxu0 %v226
    %v294 = vpop.f32.mrb[0].mxu0
    %v295 = vadd.f32 %v224, %v294
    %v296 = vpop.f32.mrb[0].mxu0
    %297 = vdwg.mxu0
    %v298 = vld [vmem:[%s2] sm:$0xff]
    %v299 = vmul.f32 %v295, 0.5
    %v300 = vmul.f32 %v299, 1.442695
    %v301 = vpow.pop %v300
    %303 = vrot.lane.b32.xlu0 %v301, 120
    %v304 = vpop.permute.xlu0 %303
    %v306 = vmul.f32 %v298, %v304
    %v307 = vadd.f32 %v295, %v306
    %v308 = vld [vmem:[#allocation3 + $0x48] sm:$0xff]
    %310 = vrot.lane.b32.xlu0 %v124, 96
    %v311 = vpop.permute.xlu0 %310
    %vm313 = vcmask 64512
    %v315 = vsel %vm313, %v307, 0
    %317 = vmatprep.subr.mxu0 0.0
    %318 = vmatpush1.msra.mxu0 %v308
    %319 = vmatprep.subr.mxu0 0.0
    %320 = vmatpush1.msra.mxu0 0.0
    %321 = vmatprep.subr.mxu0 0.0
    %322 = vmatpush1.msra.mxu0 0.0
    %323 = vmatprep.subr.mxu0 0.0
    %324 = vmatpush1.msra.mxu0 0.0
    %325 = vmatprep.subr.mxu0 0.0
    %326 = vmatpush1.msra.mxu0 0.0
    %327 = vmatprep.subr.mxu0 0.0
    %328 = vmatpush1.msra.mxu0 0.0
    %329 = vmatprep.subr.mxu0 0.0
    %330 = vmatpush1.msra.mxu0 0.0
    %331 = vmatprep.subr.mxu0 0.0
    %332 = vmatpush1.msra.mxu0 0.0
    %333 = vmatprep.subr.mxu0 0.0
    %334 = vmatpush1.msra.mxu0 0.0
    %335 = vmatprep.subr.mxu0 0.0
    %336 = vmatpush1.msra.mxu0 0.0
    %337 = vmatprep.subr.mxu0 0.0
    %338 = vmatpush1.msra.mxu0 0.0
    %339 = vmatprep.subr.mxu0 0.0
    %340 = vmatpush1.msra.mxu0 0.0
    %341 = vmatprep.subr.mxu0 0.0
    %342 = vmatpush1.msra.mxu0 0.0
    %343 = vmatprep.subr.mxu0 0.0
    %344 = vmatpush1.msra.mxu0 0.0
    %345 = vmatprep.subr.mxu0 0.0
    %346 = vmatpush1.msra.mxu0 0.0
    %347 = vmatprep.subr.mxu0 0.0
    %348 = vmatpush1.msra.mxu0 0.0
    %349 = vmatprep.subr.mxu0 0.0
    %350 = vmatpush1.msra.mxu0 0.0
    %351 = vmatprep.subr.mxu0 0.0
    %352 = vmatpush1.msra.mxu0 0.0
    %353 = vmatprep.subr.mxu0 0.0
    %354 = vmatpush1.msra.mxu0 0.0
    %355 = vmatprep.subr.mxu0 0.0
    %356 = vmatpush1.msra.mxu0 0.0
    %357 = vmatprep.subr.mxu0 0.0
    %358 = vmatpush1.msra.mxu0 0.0
    %359 = vmatprep.subr.mxu0 0.0
    %360 = vmatpush1.msra.mxu0 0.0
    %361 = vmatprep.subr.mxu0 0.0
    %362 = vmatpush1.msra.mxu0 0.0
    %363 = vmatprep.subr.mxu0 0.0
    %364 = vmatpush1.msra.mxu0 0.0
    %365 = vmatprep.subr.mxu0 0.0
    %366 = vmatpush1.msra.mxu0 0.0
    %367 = vmatprep.subr.mxu0 0.0
    %368 = vmatpush1.msra.mxu0 0.0
    %369 = vmatprep.subr.mxu0 0.0
    %370 = vmatpush1.msra.mxu0 0.0
    %371 = vmatprep.subr.mxu0 0.0
    %372 = vmatpush1.msra.mxu0 0.0
    %373 = vmatprep.subr.mxu0 0.0
    %374 = vmatpush1.msra.mxu0 0.0
    %375 = vmatprep.subr.mxu0 0.0
    %376 = vmatpush1.msra.mxu0 0.0
    %377 = vmatprep.subr.mxu0 0.0
    %378 = vmatpush1.msra.mxu0 0.0
    %379 = vmatprep.subr.mxu0 0.0
    %380 = vmatpush1.msra.mxu0 0.0
    %381 = vmatprep.mubr.f32.mxu0 0.0
    %382 = vmatmul.mubr.f32.gmra.mrb[0].mxu0 %v315
    %v383 = vpop.f32.mrb[0].mxu0
    %v384 = vadd.f32 %v311, %v383
    %v385 = vpop.f32.mrb[0].mxu0
    %386 = vdwg.mxu0
    %v387 = vld [vmem:[%s4 + $0x3] sm:$0x1]
    %v388 = vlaneseq
    %v389 = vshrl.u32 %v388, 7
    %v390 = vsub.s32 0, %v389
    %v391 = vrot.slane %v387, %v390
    %v392 = vadd.f32 %v384, %v391
    %v393 = vmax.f32 %v392, 0.0
    %v394 = vld [vmem:[#allocation3 + $0x50] sm:$0xff]
    %v395 = vld [vmem:[#allocation3 + $0x58] sm:$0xff]
    %v396 = vld [vmem:[%s4 + $0x4] sm:$0x1]
    %v397 = vlaneseq
    %v398 = vshrl.u32 %v397, 7
    %v399 = vsub.s32 0, %v398
    %v400 = vrot.slane %v396, %v399
    %v402 = vsel %vm36, %v393, 0
    %404 = vmatprep.subr.mxu0 0.0
    %405 = vmatpush1.msra.mxu0 %v394
    %406 = vmatprep.subr.mxu0 0.0
    %407 = vmatpush1.msra.mxu0 %v395
    %408 = vmatprep.subr.mxu0 0.0
    %409 = vmatpush1.msra.mxu0 0.0
    %410 = vmatprep.subr.mxu0 0.0
    %411 = vmatpush1.msra.mxu0 0.0
    %412 = vmatprep.subr.mxu0 0.0
    %413 = vmatpush1.msra.mxu0 0.0
    %414 = vmatprep.subr.mxu0 0.0
    %415 = vmatpush1.msra.mxu0 0.0
    %416 = vmatprep.subr.mxu0 0.0
    %417 = vmatpush1.msra.mxu0 0.0
    %418 = vmatprep.subr.mxu0 0.0
    %419 = vmatpush1.msra.mxu0 0.0
    %420 = vmatprep.subr.mxu0 0.0
    %421 = vmatpush1.msra.mxu0 0.0
    %422 = vmatprep.subr.mxu0 0.0
    %423 = vmatpush1.msra.mxu0 0.0
    %424 = vmatprep.subr.mxu0 0.0
    %425 = vmatpush1.msra.mxu0 0.0
    %426 = vmatprep.subr.mxu0 0.0
    %427 = vmatpush1.msra.mxu0 0.0
    %428 = vmatprep.subr.mxu0 0.0
    %429 = vmatpush1.msra.mxu0 0.0
    %430 = vmatprep.subr.mxu0 0.0
    %431 = vmatpush1.msra.mxu0 0.0
    %432 = vmatprep.subr.mxu0 0.0
    %433 = vmatpush1.msra.mxu0 0.0
    %434 = vmatprep.subr.mxu0 0.0
    %435 = vmatpush1.msra.mxu0 0.0
    %436 = vmatprep.subr.mxu0 0.0
    %437 = vmatpush1.msra.mxu0 0.0
    %438 = vmatprep.subr.mxu0 0.0
    %439 = vmatpush1.msra.mxu0 0.0
    %440 = vmatprep.subr.mxu0 0.0
    %441 = vmatpush1.msra.mxu0 0.0
    %442 = vmatprep.subr.mxu0 0.0
    %443 = vmatpush1.msra.mxu0 0.0
    %444 = vmatprep.subr.mxu0 0.0
    %445 = vmatpush1.msra.mxu0 0.0
    %446 = vmatprep.subr.mxu0 0.0
    %447 = vmatpush1.msra.mxu0 0.0
    %448 = vmatprep.subr.mxu0 0.0
    %449 = vmatpush1.msra.mxu0 0.0
    %450 = vmatprep.subr.mxu0 0.0
    %451 = vmatpush1.msra.mxu0 0.0
    %452 = vmatprep.subr.mxu0 0.0
    %453 = vmatpush1.msra.mxu0 0.0
    %454 = vmatprep.subr.mxu0 0.0
    %455 = vmatpush1.msra.mxu0 0.0
    %456 = vmatprep.subr.mxu0 0.0
    %457 = vmatpush1.msra.mxu0 0.0
    %458 = vmatprep.subr.mxu0 0.0
    %459 = vmatpush1.msra.mxu0 0.0
    %460 = vmatprep.subr.mxu0 0.0
    %461 = vmatpush1.msra.mxu0 0.0
    %462 = vmatprep.subr.mxu0 0.0
    %463 = vmatpush1.msra.mxu0 0.0
    %464 = vmatprep.subr.mxu0 0.0
    %465 = vmatpush1.msra.mxu0 0.0
    %466 = vmatprep.subr.mxu0 0.0
    %467 = vmatpush1.msra.mxu0 0.0
    %468 = vmatprep.mubr.f32.mxu0 0.0
    %469 = vmatmul.mubr.f32.gmra.mrb[0].mxu0 %v402
    %v470 = vpop.f32.mrb[0].mxu0
    %v471 = vadd.f32 %v400, %v470
    %v472 = vpop.f32.mrb[0].mxu0
    %473 = vdwg.mxu0
    %v474 = vmax.f32 %v471, 0.0
    %v475 = vld [vmem:[#allocation3 + $0x60] sm:$0xff]
    %v476 = vld [vmem:[#allocation3 + $0x68] sm:$0xff]
    %v477 = vld [vmem:[#allocation3 + $0x70] sm:$0xff]
    %v478 = vld [vmem:[#allocation3 + $0x78] sm:$0xff]
    %v479 = vld [vmem:[%s4 + $0x5] sm:$0x1]
    %v480 = vlaneseq
    %v481 = vshrl.u32 %v480, 7
    %v482 = vsub.s32 0, %v481
    %v483 = vrot.slane %v479, %v482
    %v485 = vsel %vm143, %v474, 0
    %487 = vmatprep.subr.mxu0 0.0
    %488 = vmatpush1.msra.mxu0 %v475
    %489 = vmatprep.subr.mxu0 0.0
    %490 = vmatpush1.msra.mxu0 %v476
    %491 = vmatprep.subr.mxu0 0.0
    %492 = vmatpush1.msra.mxu0 %v477
    %493 = vmatprep.subr.mxu0 0.0
    %494 = vmatpush1.msra.mxu0 %v478
    %495 = vmatprep.subr.mxu0 0.0
    %496 = vmatpush1.msra.mxu0 0.0
    %497 = vmatprep.subr.mxu0 0.0
    %498 = vmatpush1.msra.mxu0 0.0
    %499 = vmatprep.subr.mxu0 0.0
    %500 = vmatpush1.msra.mxu0 0.0
    %501 = vmatprep.subr.mxu0 0.0
    %502 = vmatpush1.msra.mxu0 0.0
    %503 = vmatprep.subr.mxu0 0.0
    %504 = vmatpush1.msra.mxu0 0.0
    %505 = vmatprep.subr.mxu0 0.0
    %506 = vmatpush1.msra.mxu0 0.0
    %507 = vmatprep.subr.mxu0 0.0
    %508 = vmatpush1.msra.mxu0 0.0
    %509 = vmatprep.subr.mxu0 0.0
    %510 = vmatpush1.msra.mxu0 0.0
    %511 = vmatprep.subr.mxu0 0.0
    %512 = vmatpush1.msra.mxu0 0.0
    %513 = vmatprep.subr.mxu0 0.0
    %514 = vmatpush1.msra.mxu0 0.0
    %515 = vmatprep.subr.mxu0 0.0
    %516 = vmatpush1.msra.mxu0 0.0
    %517 = vmatprep.subr.mxu0 0.0
    %518 = vmatpush1.msra.mxu0 0.0
    %519 = vmatprep.subr.mxu0 0.0
    %520 = vmatpush1.msra.mxu0 0.0
    %521 = vmatprep.subr.mxu0 0.0
    %522 = vmatpush1.msra.mxu0 0.0
    %523 = vmatprep.subr.mxu0 0.0
    %524 = vmatpush1.msra.mxu0 0.0
    %525 = vmatprep.subr.mxu0 0.0
    %526 = vmatpush1.msra.mxu0 0.0
    %527 = vmatprep.subr.mxu0 0.0
    %528 = vmatpush1.msra.mxu0 0.0
    %529 = vmatprep.subr.mxu0 0.0
    %530 = vmatpush1.msra.mxu0 0.0
    %531 = vmatprep.subr.mxu0 0.0
    %532 = vmatpush1.msra.mxu0 0.0
    %533 = vmatprep.subr.mxu0 0.0
    %534 = vmatpush1.msra.mxu0 0.0
    %535 = vmatprep.subr.mxu0 0.0
    %536 = vmatpush1.msra.mxu0 0.0
    %537 = vmatprep.subr.mxu0 0.0
    %538 = vmatpush1.msra.mxu0 0.0
    %539 = vmatprep.subr.mxu0 0.0
    %540 = vmatpush1.msra.mxu0 0.0
    %541 = vmatprep.subr.mxu0 0.0
    %542 = vmatpush1.msra.mxu0 0.0
    %543 = vmatprep.subr.mxu0 0.0
    %544 = vmatpush1.msra.mxu0 0.0
    %545 = vmatprep.subr.mxu0 0.0
    %546 = vmatpush1.msra.mxu0 0.0
    %547 = vmatprep.subr.mxu0 0.0
    %548 = vmatpush1.msra.mxu0 0.0
    %549 = vmatprep.subr.mxu0 0.0
    %550 = vmatpush1.msra.mxu0 0.0
    %551 = vmatprep.mubr.f32.mxu0 0.0
    %552 = vmatmul.mubr.f32.gmra.mrb[0].mxu0 %v485
    %v553 = vpop.f32.mrb[0].mxu0
    %v554 = vadd.f32 %v483, %v553
    %v555 = vpop.f32.mrb[0].mxu0
    %556 = vdwg.mxu0
    %557 = vst.msk [vmem:[#allocation6] sm:$0xff] %vm36, %v554
    %559 = vrot.lane.b32.xlu0 %v295, 16
    %v560 = vpop.permute.xlu0 %559
    %vm562 = vcmask 261248
    %563 = vst.msk [vmem:[#allocation6] sm:$0xff] %vm562, %v560
    // Predicated region
    $region26: #{tpu_custom_call.1} parent=1 // pred_check
      _
    $region27: #{tpu_custom_call.1} parent=1 // pred_check_branch
      %565 = sbr.rel (0) target = $region29
    $region28: #{tpu_custom_call.1} parent=1 // pred_region
      %s567 = ssub.s32 128, 128
      %568 = vsyncadd [#allocation5], %s567
      %s570 = sshll.u32 [#allocation6], 4
      %s571 = int_to_ptr.vmem [resolvable:$true] %s570
      %573 = dma.vmem_to_hbm [thread:$0]  %s571, 128, %s5, [#allocation5]
    $region29: #{tpu_custom_call.1} parent=1 // pred_fallthru
      _
    // Predicated region
    $region30: #{tpu_custom_call.1} parent=1 // pred_check
      _
    $region31: #{tpu_custom_call.1} parent=1 // pred_check_branch
      %575 = sbr.rel (0) target = $region33
    $region32: #{tpu_custom_call.1} parent=1 // pred_region
      %576 = dma.done [#allocation5], 128
    $region33: #{tpu_custom_call.1} parent=1 // pred_fallthru
      _
    %577 = vsyncpa [#allocation4], 1
    %578 = vsyncpa [#allocation5], 1

</llo_original>
